<compile_context>
chip_gen: v7x
topology: tpu7x:2x2x1
jax: 0.10.0
libtpu: 0.0.40
codegen_flags: <defaults>
</compile_context>

<pallas_src>
import functools

import numpy as np
import jax
import jax.numpy as jnp
from jax.experimental import pallas as pl
from jax.experimental.pallas import tpu as pltpu


# ---------------------------------------------------------------------------
# Kernel
# ---------------------------------------------------------------------------
def _sos_loss_kernel(pred_ref, gt_ref, out_ref, acc_ref, *,
                     rows, cols, bt, st, w):
    """Per-tile weighted BCE-with-logits partial sums.

    grid = (row_blocks, col_blocks); axis 1 is the reduction axis.
    acc_ref: (bt, st) f32 running elementwise accumulator (persists over axis 1).
    out_ref: (1, 8, 128) f32 per-row-block partial-sum tile (only [0,0,0] used).
    """
    i = pl.program_id(0)
    j = pl.program_id(1)
    nj = pl.num_programs(1)

    @pl.when(j == 0)
    def _():
        acc_ref[...] = jnp.zeros_like(acc_ref)

    x = pred_ref[...].astype(jnp.float32)   # logits
    y = gt_ref[...].astype(jnp.float32)     # targets in {0, 1}

    # numerically stable softplus(x) = log(1 + exp(x))
    sp = jnp.maximum(x, 0.0) + jnp.log1p(jnp.exp(-jnp.abs(x)))
    # BCEWithLogits(pos_weight=w): w*y*softplus(-x) + (1-y)*softplus(x)
    #                            = softplus(x)*(1 + (w-1)*y) - w*x*y
    l = sp * (1.0 + (w - 1.0) * y) - w * (x * y)

    # Mask out-of-bounds lanes/sublanes of edge blocks (block padding is
    # not guaranteed to be zero-filled).
    r = jax.lax.broadcasted_iota(jnp.int32, (bt, st), 0) + i * bt
    c = jax.lax.broadcasted_iota(jnp.int32, (bt, st), 1) + j * st
    l = jnp.where((r < rows) & (c < cols), l, 0.0)

    acc_ref[...] += l

    @pl.when(j == nj - 1)
    def _():
        total = jnp.sum(acc_ref[...])          # one XLU reduce per row block
        sub = jax.lax.broadcasted_iota(jnp.int32, (8, 128), 0)
        lane = jax.lax.broadcasted_iota(jnp.int32, (8, 128), 1)
        out_ref[0] = jnp.where((sub == 0) & (lane == 0), total, 0.0)


# ---------------------------------------------------------------------------
# Wrapper
# ---------------------------------------------------------------------------
def _lane_dense_2d(x: jax.Array) -> jax.Array:
    """Contiguous (metadata-only) reshape to a lane-dense 2-D slab when useful."""
    B, S = x.shape
    if S % 128 == 0 and B >= 8:
        return x
    n = B * S
    for c in (2048, 1024, 512, 256, 128):
        if n % c == 0:
            return x.reshape(n // c, c)
    return x  # tiny / odd shapes: keep as-is, kernel masks


def _pick_rows(r: int) -> int:
    if r <= 8:
        return r
    return min(256, (r // 8) * 8)


def _pick_cols(c: int) -> int:
    if c <= 128:
        return c
    return min(1024, (c // 128) * 128)


def sos_loss_pallas(preds: jax.Array, gt: jax.Array, weight: float = 5.0) -> jax.Array:
    """sum_b mean_s BCEWithLogits(pred_b, gt_b; pos_weight=weight) / B.

    Since every row has the same length S this equals the global mean, so the
    kernel computes a tiled global partial-sum reduction.
    """
    assert preds.ndim == 2 and preds.shape == gt.shape
    n_total = preds.shape[0] * preds.shape[1]

    p2 = _lane_dense_2d(preds)
    g2 = _lane_dense_2d(gt)
    rows, cols = p2.shape

    bt = _pick_rows(rows)
    st = _pick_cols(cols)
    grid_b = pl.cdiv(rows, bt)
    grid_s = pl.cdiv(cols, st)

    kernel = functools.partial(
        _sos_loss_kernel, rows=rows, cols=cols, bt=bt, st=st, w=float(weight))

    partials = pl.pallas_call(
        kernel,
        out_shape=jax.ShapeDtypeStruct((grid_b, 8, 128), jnp.float32),
        grid=(grid_b, grid_s),
        in_specs=[
            pl.BlockSpec((bt, st), lambda i, j: (i, j)),   # preds -> VMEM, pipelined
            pl.BlockSpec((bt, st), lambda i, j: (i, j)),   # gt    -> VMEM, pipelined
        ],
        out_specs=pl.BlockSpec((1, 8, 128), lambda i, j: (i, 0, 0)),
        scratch_shapes=[pltpu.VMEM((bt, st), jnp.float32)],
        compiler_params=pltpu.CompilerParams(
            dimension_semantics=("parallel", "arbitrary"),
            vmem_limit_bytes=32 * 1024 * 1024),
    )(p2, g2)

    return jnp.sum(partials) / jnp.float32(n_total)


# ---------------------------------------------------------------------------
# Ground-truth construction (host side)
# ---------------------------------------------------------------------------
# TODO(synk): get_gt_for_pred's data-dependent warping-path walk with a Python
# set has no clean Pallas equivalent; it is done host-side in numpy, exactly
# mirroring the PyTorch module's own Python loop.
def build_ground_truth(targets_np: np.ndarray, paths, seq_len: int) -> np.ndarray:
    B = targets_np.shape[0]
    gt = np.zeros((B, seq_len), dtype=np.float32)
    for b in range(B):
        done = set()
        for (i, j) in paths[b]:
            i, j = int(i), int(j)
            if targets_np[b, j] == 1 and j not in done:
                gt[b, i] = 1.0
                done.add(j)
    return gt


def _reference_loss(preds_np: np.ndarray, gt_np: np.ndarray, weight: float) -> float:
    x = preds_np.astype(np.float64)
    y = gt_np.astype(np.float64)
    sp_pos = np.maximum(x, 0.0) + np.log1p(np.exp(-np.abs(x)))
    sp_neg = sp_pos - x
    l = weight * y * sp_neg + (1.0 - y) * sp_pos
    return float(np.mean(l))   # per-row mean summed / B == global mean


if __name__ == "__main__":
    B, S = 2, 8
    weight = 5.0

    key = jax.random.PRNGKey(0)
    k_pred, k_tgt = jax.random.split(key)

    preds = jax.random.normal(k_pred, (B, S), dtype=jnp.float32)
    targets = jax.random.bernoulli(k_tgt, p=0.3, shape=(B, S)).astype(jnp.int32)

    # Deterministic zig-zag warping paths (one per batch element).
    paths = []
    for b in range(B):
        path = []
        i = j = 0
        step = 0
        while i < S - 1 or j < S - 1:
            path.append((i, j))
            if (step + b) % 3 == 0 and i < S - 1:
                i += 1
            elif (step + b) % 3 == 1 and j < S - 1:
                j += 1
            else:
                i = min(i + 1, S - 1)
                j = min(j + 1, S - 1)
            step += 1
        path.append((S - 1, S - 1))
        paths.append(np.array(path, dtype=np.int32))

    targets_np = np.asarray(targets)
    gt_np = build_ground_truth(targets_np, paths, S)
    # gt holds exact {0,1} values -> stream it as bf16 (half the HBM bytes);
    # preds stay in their native dtype (no wrapper up-cast).
    gt = jnp.asarray(gt_np, dtype=jnp.bfloat16)

    loss = sos_loss_pallas(preds, gt, weight)
    loss = jax.block_until_ready(loss)

    ref = _reference_loss(np.asarray(preds), gt_np, weight)
    np.testing.assert_allclose(float(loss), ref, rtol=1e-5, atol=1e-6)

    print("KERNEL_OK")
</pallas_src>

<mosaic_0001>
module attributes {stable_mosaic.version = 11 : i64} {
  func.func @_sos_loss_kernel(%arg0: i32, %arg1: i32, %arg2: memref<2x8xf32, #tpu.memory_space<vmem>>, %arg3: memref<2x8xbf16, #tpu.memory_space<vmem>>, %arg4: memref<1x8x128xf32, #tpu.memory_space<vmem>>, %arg5: memref<2x8xf32, #tpu.memory_space<vmem>>) attributes {dimension_semantics = [#tpu.dimension_semantics<parallel>, #tpu.dimension_semantics<arbitrary>], iteration_bounds = array<i64: 1, 1>, scalar_prefetch = 0 : i64, scratch_operands = 1 : i64, tpu.core_type = #tpu.core_type<tc>, window_params = [{transform_indices = @transform_0, window_bounds = array<i64: 2, 8>}, {transform_indices = @transform_1, window_bounds = array<i64: 2, 8>}, {transform_indices = @transform_2, window_bounds = array<i64: 1, 8, 128>}]} {
    %c0_i32 = arith.constant 0 : i32
    %0 = arith.cmpi eq, %arg1, %c0_i32 : i32
    %1 = arith.extui %0 : i1 to i32
    %c0_i32_0 = arith.constant 0 : i32
    %2 = arith.cmpi ne, %1, %c0_i32_0 : i32
    scf.if %2 {
      %cst_17 = arith.constant 0.000000e+00 : f32
      %44 = vector.broadcast %cst_17 : f32 to vector<2x8xf32>
      %c0_18 = arith.constant 0 : index
      %c0_19 = arith.constant 0 : index
      %45 = vector.load %arg5[%c0_18, %c0_19] : memref<2x8xf32, #tpu.memory_space<vmem>>, vector<2x8xf32>
      tpu.vector_store %arg5[%c0_18, %c0_19], %44 {strides = array<i32>} : memref<2x8xf32, #tpu.memory_space<vmem>>, vector<2x8xf32>,
    } else {
    }
    %c0 = arith.constant 0 : index
    %c0_1 = arith.constant 0 : index
    %3 = vector.load %arg2[%c0, %c0_1] : memref<2x8xf32, #tpu.memory_space<vmem>>, vector<2x8xf32>
    %c0_2 = arith.constant 0 : index
    %c0_3 = arith.constant 0 : index
    %4 = vector.load %arg3[%c0_2, %c0_3] : memref<2x8xbf16, #tpu.memory_space<vmem>>, vector<2x8xbf16>
    %5 = arith.extf %4 : vector<2x8xbf16> to vector<2x8xf32>
    %cst = arith.constant 0.000000e+00 : f32
    %6 = vector.broadcast %cst : f32 to vector<2x8xf32>
    %7 = arith.maximumf %3, %6 : vector<2x8xf32>
    %8 = math.absf %3 : vector<2x8xf32>
    %cst_4 = arith.constant 0.000000e+00 : f32
    %9 = vector.broadcast %cst_4 : f32 to vector<2x8xf32>
    %10 = arith.subf %9, %8 : vector<2x8xf32>
    %11 = math.exp %10 : vector<2x8xf32>
    %12 = math.log1p %11 : vector<2x8xf32>
    %13 = arith.addf %7, %12 : vector<2x8xf32>
    %cst_5 = arith.constant 4.000000e+00 : f32
    %14 = vector.broadcast %cst_5 : f32 to vector<2x8xf32>
    %15 = arith.mulf %14, %5 : vector<2x8xf32>
    %cst_6 = arith.constant 1.000000e+00 : f32
    %16 = vector.broadcast %cst_6 : f32 to vector<2x8xf32>
    %17 = arith.addf %16, %15 : vector<2x8xf32>
    %18 = arith.mulf %13, %17 : vector<2x8xf32>
    %19 = arith.mulf %3, %5 : vector<2x8xf32>
    %cst_7 = arith.constant 5.000000e+00 : f32
    %20 = vector.broadcast %cst_7 : f32 to vector<2x8xf32>
    %21 = arith.mulf %20, %19 : vector<2x8xf32>
    %22 = arith.subf %18, %21 : vector<2x8xf32>
    %23 = tpu.iota {dimensions = array<i32: 0>} : vector<2x8xi32>
    %c2_i32 = arith.constant 2 : i32
    %24 = arith.muli %arg0, %c2_i32 : i32
    %25 = vector.broadcast %24 : i32 to vector<2x8xi32>
    %26 = arith.addi %23, %25 : vector<2x8xi32>
    %27 = tpu.iota {dimensions = array<i32: 1>} : vector<2x8xi32>
    %c8_i32 = arith.constant 8 : i32
    %28 = arith.muli %arg1, %c8_i32 : i32
    %29 = vector.broadcast %28 : i32 to vector<2x8xi32>
    %30 = arith.addi %27, %29 : vector<2x8xi32>
    %c2_i32_8 = arith.constant 2 : i32
    %31 = vector.broadcast %c2_i32_8 : i32 to vector<2x8xi32>
    %32 = arith.cmpi slt, %26, %31 : vector<2x8xi32>
    %c8_i32_9 = arith.constant 8 : i32
    %33 = vector.broadcast %c8_i32_9 : i32 to vector<2x8xi32>
    %34 = arith.cmpi slt, %30, %33 : vector<2x8xi32>
    %35 = arith.andi %32, %34 : vector<2x8xi1>
    %cst_10 = arith.constant 0.000000e+00 : f32
    %36 = vector.broadcast %cst_10 : f32 to vector<2x8xf32>
    %37 = arith.select %35, %22, %36 : vector<2x8xi1>, vector<2x8xf32>
    %c0_11 = arith.constant 0 : index
    %c0_12 = arith.constant 0 : index
    %38 = vector.load %arg5[%c0_11, %c0_12] : memref<2x8xf32, #tpu.memory_space<vmem>>, vector<2x8xf32>
    %39 = arith.addf %38, %37 : vector<2x8xf32>
    %c0_13 = arith.constant 0 : index
    %c0_14 = arith.constant 0 : index
    %40 = vector.load %arg5[%c0_13, %c0_14] : memref<2x8xf32, #tpu.memory_space<vmem>>, vector<2x8xf32>
    tpu.vector_store %arg5[%c0_13, %c0_14], %39 {strides = array<i32>} : memref<2x8xf32, #tpu.memory_space<vmem>>, vector<2x8xf32>,
    %c0_i32_15 = arith.constant 0 : i32
    %41 = arith.cmpi eq, %arg1, %c0_i32_15 : i32
    %42 = arith.extui %41 : i1 to i32
    %c0_i32_16 = arith.constant 0 : i32
    %43 = arith.cmpi ne, %42, %c0_i32_16 : i32
    scf.if %43 {
      %c0_17 = arith.constant 0 : index
      %c0_18 = arith.constant 0 : index
      %44 = vector.load %arg5[%c0_17, %c0_18] : memref<2x8xf32, #tpu.memory_space<vmem>>, vector<2x8xf32>
      %45 = vector.shape_cast %44 : vector<2x8xf32> to vector<1x2x8xf32>
      %cst_19 = arith.constant dense<0.000000e+00> : vector<1xf32>
      %46 = vector.multi_reduction <add>, %45, %cst_19 [1, 2] : vector<1x2x8xf32> to vector<1xf32>
      %47 = vector.shape_cast %46 : vector<1xf32> to vector<1x1x1xf32>
      %48 = vector.extract %47[0, 0, 0] : f32 from vector<1x1x1xf32>
      %49 = tpu.iota {dimensions = array<i32: 0>} : vector<8x128xi32>
      %50 = tpu.iota {dimensions = array<i32: 1>} : vector<8x128xi32>
      %c0_i32_20 = arith.constant 0 : i32
      %51 = vector.broadcast %c0_i32_20 : i32 to vector<8x128xi32>
      %52 = arith.cmpi eq, %49, %51 : vector<8x128xi32>
      %c0_i32_21 = arith.constant 0 : i32
      %53 = vector.broadcast %c0_i32_21 : i32 to vector<8x128xi32>
      %54 = arith.cmpi eq, %50, %53 : vector<8x128xi32>
      %55 = arith.andi %52, %54 : vector<8x128xi1>
      %cst_22 = arith.constant 0.000000e+00 : f32
      %56 = vector.broadcast %48 : f32 to vector<8x128xf32>
      %57 = vector.broadcast %cst_22 : f32 to vector<8x128xf32>
      %58 = arith.select %55, %56, %57 : vector<8x128xi1>, vector<8x128xf32>
      %c0_23 = arith.constant 0 : index
      %c0_24 = arith.constant 0 : index
      %c0_25 = arith.constant 0 : index
      %59 = vector.load %arg4[%c0_23, %c0_24, %c0_25] : memref<1x8x128xf32, #tpu.memory_space<vmem>>, vector<1x8x128xf32>
      %60 = vector.shape_cast %59 : vector<1x8x128xf32> to vector<8x128xf32>
      %61 = vector.shape_cast %58 : vector<8x128xf32> to vector<1x8x128xf32>
      tpu.vector_store %arg4[%c0_23, %c0_24, %c0_25], %61 {strides = array<i32>} : memref<1x8x128xf32, #tpu.memory_space<vmem>>, vector<1x8x128xf32>,
    } else {
    }
    return
  }
  func.func @transform_0(%arg0: i32, %arg1: i32) -> (i32, i32) {
    %c0_i32 = arith.constant 0 : i32
    return %arg0, %arg1 : i32, i32
  }
  func.func @transform_1(%arg0: i32, %arg1: i32) -> (i32, i32) {
    %c0_i32 = arith.constant 0 : i32
    return %arg0, %arg1 : i32, i32
  }
  func.func @transform_2(%arg0: i32, %arg1: i32) -> (i32, i32, i32) {
    %c0_i32 = arith.constant 0 : i32
    %c0_i32_0 = arith.constant 0 : i32
    %c0_i32_1 = arith.constant 0 : i32
    return %arg0, %c0_i32, %c0_i32_0 : i32, i32, i32
  }
}

</mosaic_0001>

<llo_original>
// kernel: tpu_custom_call.1
$region0: #{tpu_custom_call.1}
  #allocation0 [shape = 'u32[]', space=smem, size = 0x4, offset = 0x4, fixed_abs, tag = 'smem constant byte address 0x4 - core index']
  #allocation1 [shape = 'u32[144,128]{1,0:T(1,128)}', space=vmem, size = 0x12000, scoped, tag = 'internal scratch']
  #allocation2 [shape = 'f32[2,8]{1,0:T(2,128)}', space=vmem, size = 0x400, scoped, tag = 'scratch operand']
  %s0 = inlined_call_operand.hbm [shape: f32[2,8], index: 0, kind: input, shape index: {}]
  %s1 = inlined_call_operand.vmem [shape: bf16[2,8], index: 1, kind: input, shape index: {}]
  %s2 = inlined_call_operand.hbm [shape: f32[1,8,128], index: 2, kind: output, shape index: {}]
  %s3 = sld [smem:[#allocation0]]
  $region30: #{tpu_custom_call.1} parent=0
    _
  %s5 = ssub.s32 1, %s3
  %s6 = scalar_select 0, %s5, %s3
  $region1: #{tpu_custom_call.1} parent=0
    #allocation3 [shape = 'u8[1024]{0}', space=vmem, size = 0x400, scoped, tag = 'input window, operand 0, single buffered']
    #allocation4 [shape = 's32[1]{0}', space=sflag, size = 0x4, scoped, tag = 'scoped memory for tpu_custom_call.1']
    #allocation5 [shape = 's32[1]{0}', space=sflag, size = 0x4, scoped, tag = 'scoped memory for tpu_custom_call.1']
    #allocation6 [shape = 'u8[4096]{0}', space=vmem, size = 0x1000, scoped, tag = 'output window, operand 0, single buffered']
    %7 = vsyncpa [#allocation4], 0
    %8 = vsyncpa [#allocation5], 0
    // Predicated region
    $region2: #{tpu_custom_call.1} parent=1 // pred_check
      _
    $region3: #{tpu_custom_call.1} parent=1 // pred_check_branch
      %10 = sbr.rel (0) target = $region5
    $region4: #{tpu_custom_call.1} parent=1 // pred_region
      %s12 = ssub.s32 32, 32
      %13 = vsyncadd [#allocation4], %s12
      %s15 = sshll.u32 [#allocation3], 4
      %s16 = int_to_ptr.vmem [resolvable:$true] %s15
      %18 = dma.hbm_to_vmem [thread:$0]  %s0, 32, %s16, [#allocation4]
    $region5: #{tpu_custom_call.1} parent=1 // pred_fallthru
      _
    // Predicated region
    $region6: #{tpu_custom_call.1} parent=1 // pred_check
      _
    $region7: #{tpu_custom_call.1} parent=1 // pred_check_branch
      %20 = sbr.rel (0) target = $region9
    $region8: #{tpu_custom_call.1} parent=1 // pred_region
      _
    $region9: #{tpu_custom_call.1} parent=1 // pred_fallthru
      _
    // Predicated region
    $region10: #{tpu_custom_call.1} parent=1 // pred_check
      _
    $region11: #{tpu_custom_call.1} parent=1 // pred_check_branch
      %22 = sbr.rel (0) target = $region13
    $region12: #{tpu_custom_call.1} parent=1 // pred_region
      %23 = dma.done [#allocation4], 32
    $region13: #{tpu_custom_call.1} parent=1 // pred_fallthru
      _
    %p24 = scmp.eq.s32.totalorder 0, 0
    // Predicated region
    $region14: #{tpu_custom_call.1} parent=1 // pred_check
      %p25 = pneg %p24
    $region15: #{tpu_custom_call.1} parent=1 // pred_check_branch
      %27 = sbr.rel (%p25) target = $region17
    $region16: #{tpu_custom_call.1} parent=1 // pred_region
      %vm28 = vcmask 58368
      %29 = vst.msk [vmem:[#allocation2] sm:$0x3] %vm28, 0.0
    $region17: #{tpu_custom_call.1} parent=1 // pred_fallthru
      _
    %v30 = vld [vmem:[#allocation3] sm:$0x3]
    %v31 = vld [vmem:[%s1] sm:$0x1]
    %v32 = vunpack.c.l.bf16 %v31
    %v33 = vmax.f32 %v30, 0.0
    %v34 = vand.u32 2147483647, %v30
    %v35 = vsub.f32 0.0, %v34
    %v36 = vmul.f32 %v35, 1.442695
    %v37 = vpow.pop %v36
    %v38 = vadd.f32 %v37, 1.0
    %v39 = vlog2.pop %v38
    %v40 = vmul.f32 %v39, 0.6931472
    %v41 = vmul.f32 -0.5, %v37
    %v42 = vadd.f32 %v41, 1.0
    %v43 = vmul.f32 %v42, %v37
    %v44 = vand.u32 2147483647, %v37
    %vm45 = vcmp.lt.f32.partialorder %v44, 0.0004427343
    %v46 = vsel %vm45, %v43, %v40
    %v47 = vadd.f32 %v33, %v46
    %v48 = vmul.f32 %v32, 4.0
    %v49 = vadd.f32 %v48, 1.0
    %v50 = vmul.f32 %v47, %v49
    %v51 = vmul.f32 %v30, %v32
    %v52 = vmul.f32 %v51, 5.0
    %v53 = vsub.f32 %v50, %v52
    %v54 = vlaneseq
    %v55 = vshrl.u32 %v54, 7
    %s56 = smul.u32 0, 2
    %v57 = vstv %s56
    %v58 = vadd.s32 %v55, %v57
    %v59 = vlaneseq
    %v60 = vand.u32 %v59, 127
    %s61 = smul.u32 0, 8
    %v62 = vstv %s61
    %v63 = vadd.s32 %v60, %v62
    %vm64 = vcmp.lt.s32.totalorder %v58, 2
    %vm65 = vcmp.lt.s32.totalorder %v63, 8
    %vm66 = vmand %vm64, %vm65
    %v67 = vsel %vm66, %v53, 0.0
    %v68 = vld [vmem:[#allocation2] sm:$0x3]
    %v69 = vadd.f32 %v68, %v67
    %vm70 = vcmask 58368
    %71 = vst.msk [vmem:[#allocation2] sm:$0x3] %vm70, %v69
    // Predicated region
    $region18: #{tpu_custom_call.1} parent=1 // pred_check
      %p72 = pneg %p24
    $region19: #{tpu_custom_call.1} parent=1 // pred_check_branch
      %74 = sbr.rel (%p72) target = $region21
    $region20: #{tpu_custom_call.1} parent=1 // pred_region
      %v75 = vld [vmem:[#allocation2] sm:$0x3]
      %v76 = vsel %vm70, %v75, 0.0
      %77 = vadd.xlane.f32.xlu0 %v76
      %v78 = vpop.xlane.xlu0 %77
      %v79 = vrot.slane %v78, 4
      %v80 = vadd.f32 %v78, %v79
      %v81 = vrot.slane %v80, 2
      %v82 = vadd.f32 %v80, %v81
      %v83 = vrot.slane %v82, 1
      %v84 = vadd.f32 %v82, %v83
      %s85 = vtos %v84
      %vm86 = vcmp.eq.s32.totalorder %v55, 0
      %vm87 = vcmp.eq.s32.totalorder %v60, 0
      %vm88 = vmand %vm86, %vm87
      %v89 = vstv %s85
      %v90 = vsel %vm88, %v89, 0.0
      %91 = vst [vmem:[#allocation6] sm:$0xff] %v90
    $region21: #{tpu_custom_call.1} parent=1 // pred_fallthru
      _
    // Predicated region
    $region22: #{tpu_custom_call.1} parent=1 // pred_check
      _
    $region23: #{tpu_custom_call.1} parent=1 // pred_check_branch
      %93 = sbr.rel (0) target = $region25
    $region24: #{tpu_custom_call.1} parent=1 // pred_region
      %s95 = ssub.s32 128, 128
      %96 = vsyncadd [#allocation5], %s95
      %s98 = sshll.u32 [#allocation6], 4
      %s99 = int_to_ptr.vmem [resolvable:$true] %s98
      %101 = dma.vmem_to_hbm [thread:$0]  %s99, 128, %s2, [#allocation5]
    $region25: #{tpu_custom_call.1} parent=1 // pred_fallthru
      _
    // Predicated region
    $region26: #{tpu_custom_call.1} parent=1 // pred_check
      _
    $region27: #{tpu_custom_call.1} parent=1 // pred_check_branch
      %103 = sbr.rel (0) target = $region29
    $region28: #{tpu_custom_call.1} parent=1 // pred_region
      %104 = dma.done [#allocation5], 128
    $region29: #{tpu_custom_call.1} parent=1 // pred_fallthru
      _
    %105 = vsyncpa [#allocation4], 1
    %106 = vsyncpa [#allocation5], 1

</llo_original>
